<compile_context>
chip_gen: v5e
topology: v5e:2x2
jax: 0.10.0
libtpu: 0.0.40
codegen_flags: <defaults>
</compile_context>

<pallas_src>
import functools

import jax
import jax.numpy as jnp
from jax.experimental import pallas as pl
from jax.experimental.pallas import tpu as pltpu

EPS = 1e-5  # nn.BatchNorm1d default


def _round_up(v, m):
    return ((v + m - 1) // m) * m


def small_block_kernel(x_ref, w_ref, gamma_ref, beta_ref, o_ref, *,
                       activation, tk):
    k = pl.program_id(1)

    # k-th slice of the VMEM-resident x (bf16), aligned to the lane tiling.
    kk = pl.multiple_of(k * tk, 128)
    x_blk = x_ref[:, pl.ds(kk, tk)]                       # (B, tk) bf16

    # (B, tk) x (tk, tn) -> (B, tn), f32 accumulation on the MXU.
    partial = jnp.dot(x_blk, w_ref[...], preferred_element_type=jnp.float32)

    @pl.when(k == 0)
    def _():
        o_ref[...] = partial                              # write, no zero-fill

    @pl.when(k > 0)
    def _():
        o_ref[...] += partial

    @pl.when(k == pl.num_programs(1) - 1)
    def _():
        y = o_ref[...]                                    # (B, tn) f32
        inv_b = 1.0 / y.shape[0]
        # BatchNorm1d, training mode: biased batch statistics per column,
        # computed in one pass (sum and sum-of-squares).
        mean = jnp.sum(y, axis=0, keepdims=True) * inv_b
        var = jnp.maximum(
            jnp.sum(y * y, axis=0, keepdims=True) * inv_b - mean * mean, 0.0)
        inv_std = jax.lax.rsqrt(var + EPS)                # EUP rsqrt
        out = gamma_ref[...] * ((y - mean) * inv_std) + beta_ref[...]
        if activation:
            out = jnp.maximum(out, 0.0)
        o_ref[...] = out.astype(o_ref.dtype)


def small_block(x, weight, bias, gamma, beta, *, activation=True,
                tn=512, tk=1024, compute_dtype=jnp.bfloat16):
    """x: (B, in_dim); weight: (out_dim, in_dim); bias/gamma/beta: (out_dim,)."""
    B, in_dim = x.shape
    out_dim, in_dim_w = weight.shape
    assert in_dim_w == in_dim

    # ---- Lane-dense padding of K and N (multiples of 128, then of the tile) ----
    Kp = _round_up(in_dim, 128)
    Np = _round_up(out_dim, 128)
    tk = min(tk, Kp)
    tn = min(tn, Np)
    # v7x megacore: keep >= 2 N tiles when possible so the "parallel" axis can
    # shard across both TensorCores (single N tile would serialize on one TC).
    if Np >= 256 and Np // tn < 2:
        tn = _round_up(Np // 2, 128)
    Kp = _round_up(Kp, tk)
    Np = _round_up(Np, tn)

    # bf16 operands for the MXU / half the HBM traffic; accumulation stays f32.
    xp = x.astype(compute_dtype)
    if Kp != in_dim:
        xp = jnp.pad(xp, ((0, 0), (0, Kp - in_dim)))
    # One-time wrapper-side transpose to (K, N): keeps the per-tile MXU path
    # free of transposes.
    wt = weight.T.astype(compute_dtype)
    if wt.shape != (Kp, Np):
        wt = jnp.pad(wt, ((0, Kp - in_dim), (0, Np - out_dim)))
    g2 = jnp.pad(gamma.astype(jnp.float32), (0, Np - out_dim),
                 constant_values=1.0).reshape(1, Np)
    b2 = jnp.pad(beta.astype(jnp.float32), (0, Np - out_dim)).reshape(1, Np)
    # Linear bias cancels exactly under training-mode BatchNorm (it shifts y
    # and mean(y) identically) -> never shipped to the kernel.
    del bias

    grid = (Np // tn, Kp // tk)

    # VMEM: resident bf16 x + double-buffered bf16 weight tiles + f32 output
    # block + gamma/beta, plus generous headroom; capped at 48 MiB so the same
    # tiles stay inside v7x's 64 MiB physical VMEM.
    vmem_bytes = (B * Kp * 2            # resident x (bf16)
                  + 2 * tk * tn * 2     # double-buffered weight tile (bf16)
                  + 2 * B * tn * 4      # output block (f32)
                  + 4 * 2 * tn * 4)     # gamma/beta
    vmem_limit = int(min(max(vmem_bytes + (8 << 20), 32 << 20), 48 << 20))

    kernel = functools.partial(small_block_kernel, activation=activation, tk=tk)

    out_padded = pl.pallas_call(
        kernel,
        out_shape=jax.ShapeDtypeStruct((B, Np), jnp.float32),
        grid_spec=pltpu.PrefetchScalarGridSpec(
            num_scalar_prefetch=0,
            grid=grid,
            in_specs=[
                pl.BlockSpec((B, Kp), lambda n, k: (0, 0)),   # x: resident
                pl.BlockSpec((tk, tn), lambda n, k: (k, n)),  # weight (K, N)
                pl.BlockSpec((1, tn), lambda n, k: (0, n)),   # gamma
                pl.BlockSpec((1, tn), lambda n, k: (0, n)),   # beta
            ],
            out_specs=pl.BlockSpec((B, tn), lambda n, k: (0, n)),
        ),
        compiler_params=pltpu.CompilerParams(
            dimension_semantics=("parallel", "arbitrary"),
            vmem_limit_bytes=vmem_limit,
        ),
    )(xp, wt, g2, b2)

    return out_padded[:, :out_dim]


def _reference(x, weight, bias, gamma, beta, activation=True):
    y = x @ weight.T + bias
    mu = y.mean(axis=0, keepdims=True)
    var = ((y - mu) ** 2).mean(axis=0, keepdims=True)
    out = gamma * (y - mu) / jnp.sqrt(var + EPS) + beta
    return jnp.maximum(out, 0.0) if activation else out


if __name__ == "__main__":
    key = jax.random.PRNGKey(0)

    # --- Small shapes implied by the module: (batch, in_dim) -> (batch, out_dim)
    B, in_dim, out_dim = 8, 32, 32
    kx, kw, kb, kg, kbe = jax.random.split(key, 5)
    x = jax.random.normal(kx, (B, in_dim), dtype=jnp.float32)
    bound = 1.0 / (in_dim ** 0.5)
    weight = jax.random.uniform(kw, (out_dim, in_dim), jnp.float32, -bound, bound)
    bias = jax.random.uniform(kb, (out_dim,), jnp.float32, -bound, bound)
    gamma = jax.random.uniform(kg, (out_dim,), jnp.float32, 0.5, 1.5)
    beta = 0.1 * jax.random.normal(kbe, (out_dim,), jnp.float32)

    out = small_block(x, weight, bias, gamma, beta)
    jax.block_until_ready(out)
    ref = _reference(x, weight, bias, gamma, beta)
    assert out.shape == ref.shape
    assert jnp.allclose(out, ref, atol=2e-2, rtol=2e-2)   # bf16 matmul inputs

    # --- Larger shape to exercise the tiled (N, K) grid + K accumulation path.
    B2, in2, out2 = 64, 1024, 512
    k1, k2, k3, k4, k5 = jax.random.split(jax.random.PRNGKey(1), 5)
    x2 = jax.random.normal(k1, (B2, in2), jnp.float32)
    bnd2 = 1.0 / (in2 ** 0.5)
    w2 = jax.random.uniform(k2, (out2, in2), jnp.float32, -bnd2, bnd2)
    b2 = jax.random.uniform(k3, (out2,), jnp.float32, -bnd2, bnd2)
    g2 = jax.random.uniform(k4, (out2,), jnp.float32, 0.5, 1.5)
    be2 = 0.1 * jax.random.normal(k5, (out2,), jnp.float32)

    out2_ = small_block(x2, w2, b2, g2, be2)
    jax.block_until_ready(out2_)
    ref2 = _reference(x2, w2, b2, g2, be2)
    assert jnp.allclose(out2_, ref2, atol=3e-2, rtol=3e-2)  # bf16 matmul inputs

    print("KERNEL_OK")
</pallas_src>

<mosaic_0001>
module attributes {stable_mosaic.version = 11 : i64} {
  func.func @small_block_kernel(%arg0: i32, %arg1: i32, %arg2: memref<8x128xbf16, #tpu.memory_space<vmem>>, %arg3: memref<128x128xbf16, #tpu.memory_space<vmem>>, %arg4: memref<1x128xf32, #tpu.memory_space<vmem>>, %arg5: memref<1x128xf32, #tpu.memory_space<vmem>>, %arg6: memref<8x128xf32, #tpu.memory_space<vmem>>) attributes {dimension_semantics = [#tpu.dimension_semantics<parallel>, #tpu.dimension_semantics<arbitrary>], iteration_bounds = array<i64: 1, 1>, scalar_prefetch = 0 : i64, scratch_operands = 0 : i64, tpu.core_type = #tpu.core_type<tc>, window_params = [{pipeline_mode = #tpu.pipeline_mode<synchronous>, transform_indices = @transform_0, window_bounds = array<i64: 8, 128>}, {transform_indices = @transform_1, window_bounds = array<i64: 128, 128>}, {transform_indices = @transform_2, window_bounds = array<i64: 1, 128>}, {transform_indices = @transform_3, window_bounds = array<i64: 1, 128>}, {transform_indices = @transform_4, window_bounds = array<i64: 8, 128>}]} {
    %c128_i32 = arith.constant 128 : i32
    %0 = arith.muli %arg1, %c128_i32 : i32
    %1 = tpu.assume_multiple %0, 128 : i32
    %c0 = arith.constant 0 : index
    %2 = arith.index_cast %1 : i32 to index
    %3 = vector.load %arg2[%c0, %2] : memref<8x128xbf16, #tpu.memory_space<vmem>>, vector<8x128xbf16>
    %c0_0 = arith.constant 0 : index
    %c0_1 = arith.constant 0 : index
    %4 = vector.load %arg3[%c0_0, %c0_1] : memref<128x128xbf16, #tpu.memory_space<vmem>>, vector<128x128xbf16>
    %cst = arith.constant dense<0.000000e+00> : vector<8x128xf32>
    %5 = tpu.matmul %3, %4, %cst {dimension_numbers = #tpu.dot_dimension_numbers<[1], [0], [0], [1], [0, 0, 1, 1], [], []>} : vector<8x128xbf16>, vector<128x128xbf16>, vector<8x128xf32> -> vector<8x128xf32>
    %c0_i32 = arith.constant 0 : i32
    %6 = arith.cmpi eq, %arg1, %c0_i32 : i32
    %7 = arith.extui %6 : i1 to i32
    %c0_i32_2 = arith.constant 0 : i32
    %8 = arith.cmpi ne, %7, %c0_i32_2 : i32
    scf.if %8 {
      %c0_7 = arith.constant 0 : index
      %c0_8 = arith.constant 0 : index
      %15 = vector.load %arg6[%c0_7, %c0_8] : memref<8x128xf32, #tpu.memory_space<vmem>>, vector<8x128xf32>
      tpu.vector_store %arg6[%c0_7, %c0_8], %5 {strides = array<i32>} : memref<8x128xf32, #tpu.memory_space<vmem>>, vector<8x128xf32>,
    } else {
    }
    %c0_i32_3 = arith.constant 0 : i32
    %9 = arith.cmpi sgt, %arg1, %c0_i32_3 : i32
    %10 = arith.extui %9 : i1 to i32
    %c0_i32_4 = arith.constant 0 : i32
    %11 = arith.cmpi ne, %10, %c0_i32_4 : i32
    scf.if %11 {
      %c0_7 = arith.constant 0 : index
      %c0_8 = arith.constant 0 : index
      %15 = vector.load %arg6[%c0_7, %c0_8] : memref<8x128xf32, #tpu.memory_space<vmem>>, vector<8x128xf32>
      %16 = arith.addf %15, %5 : vector<8x128xf32>
      %c0_9 = arith.constant 0 : index
      %c0_10 = arith.constant 0 : index
      %17 = vector.load %arg6[%c0_9, %c0_10] : memref<8x128xf32, #tpu.memory_space<vmem>>, vector<8x128xf32>
      tpu.vector_store %arg6[%c0_9, %c0_10], %16 {strides = array<i32>} : memref<8x128xf32, #tpu.memory_space<vmem>>, vector<8x128xf32>,
    } else {
    }
    %c0_i32_5 = arith.constant 0 : i32
    %12 = arith.cmpi eq, %arg1, %c0_i32_5 : i32
    %13 = arith.extui %12 : i1 to i32
    %c0_i32_6 = arith.constant 0 : i32
    %14 = arith.cmpi ne, %13, %c0_i32_6 : i32
    scf.if %14 {
      %c0_7 = arith.constant 0 : index
      %c0_8 = arith.constant 0 : index
      %15 = vector.load %arg6[%c0_7, %c0_8] : memref<8x128xf32, #tpu.memory_space<vmem>>, vector<8x128xf32>
      %cst_9 = arith.constant dense<0.000000e+00> : vector<128xf32>
      %16 = vector.multi_reduction <add>, %15, %cst_9 [0] : vector<8x128xf32> to vector<128xf32>
      %17 = vector.shape_cast %16 : vector<128xf32> to vector<1x128xf32>
      %cst_10 = arith.constant 1.250000e-01 : f32
      %18 = vector.broadcast %cst_10 : f32 to vector<1x128xf32>
      %19 = arith.mulf %17, %18 : vector<1x128xf32>
      %20 = arith.mulf %15, %15 : vector<8x128xf32>
      %cst_11 = arith.constant dense<0.000000e+00> : vector<128xf32>
      %21 = vector.multi_reduction <add>, %20, %cst_11 [0] : vector<8x128xf32> to vector<128xf32>
      %22 = vector.shape_cast %21 : vector<128xf32> to vector<1x128xf32>
      %cst_12 = arith.constant 1.250000e-01 : f32
      %23 = vector.broadcast %cst_12 : f32 to vector<1x128xf32>
      %24 = arith.mulf %22, %23 : vector<1x128xf32>
      %25 = arith.mulf %19, %19 : vector<1x128xf32>
      %26 = arith.subf %24, %25 : vector<1x128xf32>
      %cst_13 = arith.constant 0.000000e+00 : f32
      %27 = vector.broadcast %cst_13 : f32 to vector<1x128xf32>
      %28 = arith.maximumf %26, %27 : vector<1x128xf32>
      %cst_14 = arith.constant 9.99999974E-6 : f32
      %29 = vector.broadcast %cst_14 : f32 to vector<1x128xf32>
      %30 = arith.addf %28, %29 : vector<1x128xf32>
      %31 = math.rsqrt %30 : vector<1x128xf32>
      %c0_15 = arith.constant 0 : index
      %c0_16 = arith.constant 0 : index
      %32 = vector.load %arg4[%c0_15, %c0_16] : memref<1x128xf32, #tpu.memory_space<vmem>>, vector<1x128xf32>
      %33 = vector.broadcast %19 : vector<1x128xf32> to vector<8x128xf32>
      %34 = arith.subf %15, %33 : vector<8x128xf32>
      %35 = vector.broadcast %31 : vector<1x128xf32> to vector<8x128xf32>
      %36 = arith.mulf %34, %35 : vector<8x128xf32>
      %37 = vector.broadcast %32 : vector<1x128xf32> to vector<8x128xf32>
      %38 = arith.mulf %37, %36 : vector<8x128xf32>
      %c0_17 = arith.constant 0 : index
      %c0_18 = arith.constant 0 : index
      %39 = vector.load %arg5[%c0_17, %c0_18] : memref<1x128xf32, #tpu.memory_space<vmem>>, vector<1x128xf32>
      %40 = vector.broadcast %39 : vector<1x128xf32> to vector<8x128xf32>
      %41 = arith.addf %38, %40 : vector<8x128xf32>
      %cst_19 = arith.constant 0.000000e+00 : f32
      %42 = vector.broadcast %cst_19 : f32 to vector<8x128xf32>
      %43 = arith.maximumf %41, %42 : vector<8x128xf32>
      %c0_20 = arith.constant 0 : index
      %c0_21 = arith.constant 0 : index
      %44 = vector.load %arg6[%c0_20, %c0_21] : memref<8x128xf32, #tpu.memory_space<vmem>>, vector<8x128xf32>
      tpu.vector_store %arg6[%c0_20, %c0_21], %43 {strides = array<i32>} : memref<8x128xf32, #tpu.memory_space<vmem>>, vector<8x128xf32>,
    } else {
    }
    return
  }
  func.func @transform_0(%arg0: i32, %arg1: i32) -> (i32, i32) {
    %c0_i32 = arith.constant 0 : i32
    %c0_i32_0 = arith.constant 0 : i32
    %c0_i32_1 = arith.constant 0 : i32
    return %c0_i32, %c0_i32_0 : i32, i32
  }
  func.func @transform_1(%arg0: i32, %arg1: i32) -> (i32, i32) {
    %c0_i32 = arith.constant 0 : i32
    return %arg1, %arg0 : i32, i32
  }
  func.func @transform_2(%arg0: i32, %arg1: i32) -> (i32, i32) {
    %c0_i32 = arith.constant 0 : i32
    %c0_i32_0 = arith.constant 0 : i32
    return %c0_i32, %arg0 : i32, i32
  }
  func.func @transform_3(%arg0: i32, %arg1: i32) -> (i32, i32) {
    %c0_i32 = arith.constant 0 : i32
    %c0_i32_0 = arith.constant 0 : i32
    return %c0_i32, %arg0 : i32, i32
  }
  func.func @transform_4(%arg0: i32, %arg1: i32) -> (i32, i32) {
    %c0_i32 = arith.constant 0 : i32
    %c0_i32_0 = arith.constant 0 : i32
    return %c0_i32, %arg0 : i32, i32
  }
}

</mosaic_0001>

<llo_original>
// kernel: tpu_custom_call.1
$region0: #{tpu_custom_call.1}
  #allocation0 [shape = 'u32[]', space=smem, size = 0x4, offset = 0x4, fixed_abs, tag = 'smem constant byte address 0x4 - core index']
  #allocation1 [shape = 'u32[72,128]{1,0:T(1,128)}', space=vmem, size = 0x9000, scoped, tag = 'internal scratch']
  %s0 = inlined_call_operand.hbm [shape: bf16[8,128], index: 0, kind: input, shape index: {}]
  %s1 = inlined_call_operand.hbm [shape: bf16[128,128], index: 1, kind: input, shape index: {}]
  %s2 = inlined_call_operand.vmem [shape: f32[1,128], index: 2, kind: input, shape index: {}]
  %s3 = inlined_call_operand.vmem [shape: f32[1,128], index: 3, kind: input, shape index: {}]
  %s4 = inlined_call_operand.hbm [shape: f32[8,128], index: 4, kind: output, shape index: {}]
  %s5 = sld [smem:[#allocation0]]
  $region46: #{tpu_custom_call.1} parent=0
    _
  %s7 = ssub.s32 1, %s5
  %s8 = scalar_select 0, %s7, %s5
  $region1: #{tpu_custom_call.1} parent=0
    #allocation2 [shape = 'u8[2048]{0}', space=vmem, size = 0x800, scoped, tag = 'input window, operand 0, single buffered']
    #allocation3 [shape = 's32[1]{0}', space=sflag, size = 0x4, scoped, tag = 'scoped memory for tpu_custom_call.1']
    #allocation4 [shape = 's32[1]{0}', space=sflag, size = 0x4, scoped, tag = 'scoped memory for tpu_custom_call.1']
    #allocation5 [shape = 'u8[32768]{0}', space=vmem, size = 0x8000, scoped, tag = 'input window, operand 1, single buffered']
    #allocation6 [shape = 's32[1]{0}', space=sflag, size = 0x4, scoped, tag = 'scoped memory for tpu_custom_call.1']
    #allocation7 [shape = 'u8[4096]{0}', space=vmem, size = 0x1000, scoped, tag = 'output window, operand 0, single buffered']
    %9 = vsyncpa [#allocation3], 0
    %10 = vsyncpa [#allocation6], 0
    %11 = vsyncpa [#allocation4], 0
    // Predicated region
    $region2: #{tpu_custom_call.1} parent=1 // pred_check
      _
    $region3: #{tpu_custom_call.1} parent=1 // pred_check_branch
      %13 = sbr.rel (0) target = $region5
    $region4: #{tpu_custom_call.1} parent=1 // pred_region
      %15 = vsyncadd [#allocation3], 0
      %s17 = sshll.u32 %s0, 4
      %s18 = int_to_ptr.hbm [resolvable:$true] %s17
      %s19 = sshll.u32 [#allocation2], 4
      %s20 = int_to_ptr.vmem [resolvable:$true] %s19
      %22 = dma.hbm_to_vmem [thread:$0]  %s18, 64, %s20, [#allocation3]
    $region5: #{tpu_custom_call.1} parent=1 // pred_fallthru
      _
    // Predicated region
    $region6: #{tpu_custom_call.1} parent=1 // pred_check
      _
    $region7: #{tpu_custom_call.1} parent=1 // pred_check_branch
      %24 = sbr.rel (0) target = $region9
    $region8: #{tpu_custom_call.1} parent=1 // pred_region
      %26 = vsyncadd [#allocation6], 0
      %s27 = sshll.u32 %s1, 4
      %s28 = int_to_ptr.hbm [resolvable:$true] %s27
      %s29 = sshll.u32 [#allocation5], 4
      %s30 = int_to_ptr.vmem [resolvable:$true] %s29
      %35 = dma.hbm_to_vmem [thread:$0]  %s28, 1024, %s30, [#allocation6], 64, 64, 4
    $region9: #{tpu_custom_call.1} parent=1 // pred_fallthru
      _
    // Predicated region
    $region10: #{tpu_custom_call.1} parent=1 // pred_check
      _
    $region11: #{tpu_custom_call.1} parent=1 // pred_check_branch
      %37 = sbr.rel (0) target = $region13
    $region12: #{tpu_custom_call.1} parent=1 // pred_region
      _
    $region13: #{tpu_custom_call.1} parent=1 // pred_fallthru
      _
    // Predicated region
    $region14: #{tpu_custom_call.1} parent=1 // pred_check
      _
    $region15: #{tpu_custom_call.1} parent=1 // pred_check_branch
      %39 = sbr.rel (0) target = $region17
    $region16: #{tpu_custom_call.1} parent=1 // pred_region
      _
    $region17: #{tpu_custom_call.1} parent=1 // pred_fallthru
      _
    // Predicated region
    $region18: #{tpu_custom_call.1} parent=1 // pred_check
      _
    $region19: #{tpu_custom_call.1} parent=1 // pred_check_branch
      %41 = sbr.rel (0) target = $region21
    $region20: #{tpu_custom_call.1} parent=1 // pred_region
      %43 = dma.done [#allocation3], 64
    $region21: #{tpu_custom_call.1} parent=1 // pred_fallthru
      _
    // Predicated region
    $region22: #{tpu_custom_call.1} parent=1 // pred_check
      _
    $region23: #{tpu_custom_call.1} parent=1 // pred_check_branch
      %45 = sbr.rel (0) target = $region25
    $region24: #{tpu_custom_call.1} parent=1 // pred_region
      %47 = dma.done [#allocation6], 1024
    $region25: #{tpu_custom_call.1} parent=1 // pred_fallthru
      _
    %s48 = smul.u32 0, 128
    %s49 = sshra.s32 %s48, 7
    %s50 = sand.u32 %s48, 127
    %s51 = smul.addr %s49, 4
    %s52 = scalar_lea.vmem [#allocation2], %s51
    %v53 = vld [vmem:[%s52] sm:$0xf]
    %v54 = vld [vmem:[#allocation5] sm:$0xf]
    %v55 = vld [vmem:[#allocation5 + $0x4] sm:$0xf]
    %v56 = vld [vmem:[#allocation5 + $0x8] sm:$0xf]
    %v57 = vld [vmem:[#allocation5 + $0xc] sm:$0xf]
    %v58 = vld [vmem:[#allocation5 + $0x10] sm:$0xf]
    %v59 = vld [vmem:[#allocation5 + $0x14] sm:$0xf]
    %v60 = vld [vmem:[#allocation5 + $0x18] sm:$0xf]
    %v61 = vld [vmem:[#allocation5 + $0x1c] sm:$0xf]
    %v62 = vld [vmem:[#allocation5 + $0x20] sm:$0xf]
    %v63 = vld [vmem:[#allocation5 + $0x24] sm:$0xf]
    %v64 = vld [vmem:[#allocation5 + $0x28] sm:$0xf]
    %v65 = vld [vmem:[#allocation5 + $0x2c] sm:$0xf]
    %v66 = vld [vmem:[#allocation5 + $0x30] sm:$0xf]
    %v67 = vld [vmem:[#allocation5 + $0x34] sm:$0xf]
    %v68 = vld [vmem:[#allocation5 + $0x38] sm:$0xf]
    %v69 = vld [vmem:[#allocation5 + $0x3c] sm:$0xf]
    %v86 = vunpack.c.l.b16 %v54
    %v87 = vunpack.c.l.b16 %v55
    %v88 = vunpack.c.l.b16 %v56
    %v89 = vunpack.c.l.b16 %v57
    %v90 = vunpack.c.l.b16 %v58
    %v91 = vunpack.c.l.b16 %v59
    %v92 = vunpack.c.l.b16 %v60
    %v93 = vunpack.c.l.b16 %v61
    %v94 = vunpack.c.l.b16 %v62
    %v95 = vunpack.c.l.b16 %v63
    %v96 = vunpack.c.l.b16 %v64
    %v97 = vunpack.c.l.b16 %v65
    %v98 = vunpack.c.l.b16 %v66
    %v99 = vunpack.c.l.b16 %v67
    %v100 = vunpack.c.l.b16 %v68
    %v101 = vunpack.c.l.b16 %v69
    %v102 = vpack.c.b16 %v87, %v86
    %v103 = vpack.c.b16 %v89, %v88
    %v104 = vpack.c.b16 %v91, %v90
    %v105 = vpack.c.b16 %v93, %v92
    %v106 = vpack.c.b16 %v95, %v94
    %v107 = vpack.c.b16 %v97, %v96
    %v108 = vpack.c.b16 %v99, %v98
    %v109 = vpack.c.b16 %v101, %v100
    %118 = vmatpush.bf16.msra.mxu0 %v109
    %119 = vmatpush.bf16.msra.mxu0 %v108
    %120 = vmatpush.bf16.msra.mxu0 %v107
    %121 = vmatpush.bf16.msra.mxu0 %v106
    %122 = vmatpush.bf16.msra.mxu0 %v105
    %123 = vmatpush.bf16.msra.mxu0 %v104
    %124 = vmatpush.bf16.msra.mxu0 %v103
    %125 = vmatpush.bf16.msra.mxu0 %v102
    %126 = vmatmul.bf16.gmra.mxu0 %v53
    %v127 = vpop.f32.mrf.mxu0
    %v128 = vadd.f32 0.0, %v127
    %v129 = vpop.f32.mrf.mxu0
    %130 = vdwg.mxu0
    %p131 = scmp.eq.s32.totalorder 0, 0
    // Predicated region
    $region26: #{tpu_custom_call.1} parent=1 // pred_check
      %p132 = pneg %p131
    $region27: #{tpu_custom_call.1} parent=1 // pred_check_branch
      %134 = sbr.rel (%p132) target = $region29
    $region28: #{tpu_custom_call.1} parent=1 // pred_region
      %135 = vst [vmem:[#allocation7] sm:$0xff] %v128
    $region29: #{tpu_custom_call.1} parent=1 // pred_fallthru
      _
    %p136 = scmp.gt.s32.totalorder 0, 0
    // Predicated region
    $region30: #{tpu_custom_call.1} parent=1 // pred_check
      %p137 = pneg %p136
    $region31: #{tpu_custom_call.1} parent=1 // pred_check_branch
      %139 = sbr.rel (%p137) target = $region33
    $region32: #{tpu_custom_call.1} parent=1 // pred_region
      %v140 = vld [vmem:[#allocation7] sm:$0xff]
      %v141 = vadd.f32 %v140, %v128
      %142 = vst [vmem:[#allocation7] sm:$0xff] %v141
    $region33: #{tpu_custom_call.1} parent=1 // pred_fallthru
      _
    // Predicated region
    $region34: #{tpu_custom_call.1} parent=1 // pred_check
      %p143 = pneg %p131
    $region35: #{tpu_custom_call.1} parent=1 // pred_check_branch
      %145 = sbr.rel (%p143) target = $region37
    $region36: #{tpu_custom_call.1} parent=1 // pred_region
      %v146 = vld [vmem:[#allocation7] sm:$0xff]
      %v147 = vrot.slane %v146, 4
      %v148 = vadd.f32 %v146, %v147
      %v149 = vrot.slane %v148, 2
      %v150 = vadd.f32 %v148, %v149
      %v151 = vrot.slane %v150, 1
      %v152 = vadd.f32 %v150, %v151
      %v153 = vmul.f32 %v152, 0.125
      %v154 = vmul.f32 %v146, %v146
      %v155 = vrot.slane %v154, 4
      %v156 = vadd.f32 %v154, %v155
      %v157 = vrot.slane %v156, 2
      %v158 = vadd.f32 %v156, %v157
      %v159 = vrot.slane %v158, 1
      %v160 = vadd.f32 %v158, %v159
      %v161 = vmul.f32 %v160, 0.125
      %v162 = vmul.f32 %v153, %v153
      %v163 = vsub.f32 %v161, %v162
      %v164 = vmax.f32 %v163, 0.0
      %v165 = vadd.f32 %v164, 1e-05
      %v166 = vrsqrt.pop %v165
      %v167 = vmul.f32 %v166, %v165
      %v168 = vmul.f32 %v167, %v166
      %v169 = vmul.f32 0.5, %v168
      %v170 = vsub.f32 1.5, %v169
      %v171 = vmul.f32 %v166, %v170
      %vm172 = vweird.f32 %v165
      %vm173 = vweird.f32 %v166
      %vm174 = vmor %vm172, %vm173
      %v175 = vsel %vm174, %v166, %v171
      %v176 = vld [vmem:[%s2] sm:$0x1]
      %v177 = vsub.f32 %v146, %v153
      %v178 = vmul.f32 %v177, %v175
      %v180 = vperm.slane %v176, 0
      %v182 = vmul.f32 %v180, %v178
      %v183 = vld [vmem:[%s3] sm:$0x1]
      %v185 = vperm.slane %v183, 0
      %v187 = vadd.f32 %v182, %v185
      %v188 = vmax.f32 %v187, 0.0
      %189 = vst [vmem:[#allocation7] sm:$0xff] %v188
    $region37: #{tpu_custom_call.1} parent=1 // pred_fallthru
      _
    // Predicated region
    $region38: #{tpu_custom_call.1} parent=1 // pred_check
      _
    $region39: #{tpu_custom_call.1} parent=1 // pred_check_branch
      %191 = sbr.rel (0) target = $region41
    $region40: #{tpu_custom_call.1} parent=1 // pred_region
      %193 = vsyncadd [#allocation4], 0
      %s195 = sshll.u32 [#allocation7], 4
      %s196 = int_to_ptr.vmem [resolvable:$true] %s195
      %s197 = sshll.u32 %s4, 4
      %s198 = int_to_ptr.hbm [resolvable:$true] %s197
      %200 = dma.vmem_to_hbm [thread:$0]  %s196, 128, %s198, [#allocation4]
    $region41: #{tpu_custom_call.1} parent=1 // pred_fallthru
      _
    // Predicated region
    $region42: #{tpu_custom_call.1} parent=1 // pred_check
      _
    $region43: #{tpu_custom_call.1} parent=1 // pred_check_branch
      %202 = sbr.rel (0) target = $region45
    $region44: #{tpu_custom_call.1} parent=1 // pred_region
      %204 = dma.done [#allocation4], 128
    $region45: #{tpu_custom_call.1} parent=1 // pred_fallthru
      _
    %205 = vsyncpa [#allocation3], 1
    %206 = vsyncpa [#allocation6], 1
    %207 = vsyncpa [#allocation4], 1

</llo_original>
